<compile_context>
chip_gen: v7x
topology: tpu7x:2x2x1
jax: 0.10.0
libtpu: 0.0.40
codegen_flags: <defaults>
</compile_context>

<pallas_src>
import collections
import functools

import jax
import jax.numpy as jnp
from jax.experimental import pallas as pl
from jax.experimental.pallas import tpu as pltpu


def _round_up(x, m):
    return (x + m - 1) // m * m


def _vmem_cap_bytes():
    """~85% of per-core physical VMEM; conservative 64 MiB fallback (v7x)."""
    phys = 64 << 20
    try:
        info = pltpu.get_tpu_info()
        cap = getattr(info, "vmem_capacity_bytes", None)
        if cap:
            phys = int(cap)
    except Exception:
        pass
    return int(phys * 0.85)


def _sigmoid(z, approx):
    # exp runs on the EUP; with approx=True the divide also becomes an EUP
    # reciprocal (free slot) instead of a VPU divide.  Exact divide is kept for
    # the f32 path so tight-tolerance checks still pass.
    ez = jnp.exp(-z)
    if approx:
        return pl.reciprocal(1.0 + ez, approx=True)
    return 1.0 / (1.0 + ez)


def _weight_spec(shape, index_map, single):
    """Grid-invariant weight operand; Buffered(1) halves its VMEM footprint."""
    if single:
        return pl.BlockSpec(shape, index_map, pipeline_mode=pl.Buffered(1))
    return pl.BlockSpec(shape, index_map)


def _with_single_buffered_weights(call_fn):
    # Fall back to default double-buffering only if this jax/Mosaic build
    # rejects buffer_count=1 for grid-invariant operands.
    try:
        return call_fn(True)
    except Exception:   # pragma: no cover - back-compat fallback only
        return call_fn(False)


# ---------------------------------------------------------------------------
# Kernels
# ---------------------------------------------------------------------------
def _fwd_resident_kernel(x_ref, w1m_ref, w2m_ref, out_ref, *, approx):
    """output = sigmoid(sigmoid(X @ W1m) @ W2m); both weights VMEM-resident."""
    h = _sigmoid(jnp.dot(x_ref[...], w1m_ref[...],
                         preferred_element_type=jnp.float32), approx)
    out_ref[...] = _sigmoid(
        jnp.dot(h.astype(w2m_ref.dtype), w2m_ref[...],
                preferred_element_type=jnp.float32), approx
    ).astype(out_ref.dtype)


def _fwd_tiled_kernel(x_ref, w1m_ref, w2m_ref, out_ref, h_ref, *, approx):
    """Grid = (batch tiles, W2-column tiles).  hidden is computed once per
    batch tile (j == 0) into VMEM scratch and reused for every column tile."""
    @pl.when(pl.program_id(1) == 0)
    def _():
        h_ref[...] = _sigmoid(
            jnp.dot(x_ref[...], w1m_ref[...],
                    preferred_element_type=jnp.float32), approx
        ).astype(h_ref.dtype)

    out_ref[...] = _sigmoid(
        jnp.dot(h_ref[...], w2m_ref[...],
                preferred_element_type=jnp.float32), approx
    ).astype(out_ref.dtype)


def _encode_kernel(x_ref, w1m_ref, hid_ref, *, approx):
    """hidden = sigmoid(X @ W1m) (return_features=True path)."""
    hid_ref[...] = _sigmoid(
        jnp.dot(x_ref[...], w1m_ref[...],
                preferred_element_type=jnp.float32), approx
    ).astype(hid_ref.dtype)


# ---------------------------------------------------------------------------
# Weight preparation (hoisted out of the per-call path)
# ---------------------------------------------------------------------------
PreparedWeights = collections.namedtuple(
    "PreparedWeights", ["W1p", "W2p", "num_input", "num_features", "compute_dtype"])


def prepare_weights(W1, W2, mask, *, use_bf16=True):
    """Mask-multiply, transpose, pad to (8,128)-aligned tiles, and cast once."""
    num_input, num_features = W1.shape
    compute_dtype = jnp.bfloat16 if use_bf16 else jnp.float32
    n_pad = _round_up(num_input, 128)
    f_pad = _round_up(num_features, 128)
    W1m = W1 * mask              # (N_in, F)
    W2m = W2 * mask.T            # (F, N_in)
    W1p = jnp.pad(W1m, ((0, n_pad - num_input), (0, f_pad - num_features))
                  ).astype(compute_dtype)
    W2p = jnp.pad(W2m, ((0, f_pad - num_features), (0, n_pad - num_input))
                  ).astype(compute_dtype)
    return PreparedWeights(W1p, W2p, num_input, num_features, compute_dtype)


# ---------------------------------------------------------------------------
# Wrapper
# ---------------------------------------------------------------------------
def autoencoder_forward(X, W1=None, W2=None, mask=None, return_features=False,
                        *, block_b=512, use_bf16=True, prepared=None):
    """Pallas TPU implementation of MyModel.forward.

    Pass either raw (W1, W2, mask) or `prepared=prepare_weights(...)` (the
    latter skips the per-call mask/pad/cast weight traffic).
    Padding is numerically exact: padded hidden columns are sigmoid(0)=0.5 but
    multiply all-zero rows of the padded W2; padded batch rows are sliced off.
    """
    if prepared is None:
        assert W1 is not None and W2 is not None and mask is not None
        prepared = prepare_weights(W1, W2, mask, use_bf16=use_bf16)
    W1p, W2p, num_input, num_features, compute_dtype = prepared
    n_pad, f_pad = W1p.shape

    B = X.shape[0]
    assert X.shape[1] == num_input
    out_dtype = jnp.float32
    itemsize = jnp.dtype(compute_dtype).itemsize
    out_itemsize = jnp.dtype(out_dtype).itemsize
    approx = jnp.dtype(compute_dtype) == jnp.dtype(jnp.bfloat16)

    # Batch tile: native sublane multiple for the compute dtype (bf16 packs two
    # rows per sublane), and >= 2 tiles when the batch allows so the "parallel"
    # axis can feed both v7x TensorCores.
    sub = 16 if itemsize == 2 else 8
    tb = min(_round_up(B, sub), _round_up(block_b, sub))
    b_pad = _round_up(B, tb)
    if b_pad // tb < 2 and B >= 2 * sub:
        tb = _round_up(b_pad // 2, sub)
        b_pad = _round_up(B, tb)

    vmem_cap = _vmem_cap_bytes()
    headroom = 2 << 20

    def pad_x(b_pad_):
        if b_pad_ != B or n_pad != num_input:
            xp = jnp.pad(X, ((0, b_pad_ - B), (0, n_pad - num_input)))
        else:
            xp = X
        return xp.astype(compute_dtype)

    # ------------------------------------------------------------- encode only
    if return_features:
        def enc_est(tf_, single=True):
            w1_bufs = 1 if (single and tf_ == f_pad) else 2
            return (w1_bufs * itemsize * n_pad * tf_      # W1
                    + 2 * itemsize * tb * n_pad           # X blocks
                    + 2 * out_itemsize * tb * tf_         # hidden blocks
                    + headroom)

        tf = f_pad   # keep W1 resident when it fits; otherwise tile feature cols
        while tf > 128 and (f_pad % tf != 0 or enc_est(tf) > vmem_cap):
            tf -= 128

        Xp = pad_x(b_pad)
        grid = (b_pad // tb, f_pad // tf)
        cost = pl.CostEstimate(
            flops=2 * b_pad * n_pad * f_pad,
            transcendentals=b_pad * f_pad,
            bytes_accessed=int(itemsize * (b_pad * n_pad + n_pad * f_pad)
                               + out_itemsize * b_pad * f_pad))
        kernel = functools.partial(_encode_kernel, approx=approx)

        def call(single):
            w1_spec = _weight_spec((n_pad, tf), lambda i, j: (0, j),
                                   single and tf == f_pad)
            vmem_limit = int(min(max(enc_est(tf, single), 32 << 20), vmem_cap))
            return pl.pallas_call(
                kernel,
                out_shape=jax.ShapeDtypeStruct((b_pad, f_pad), out_dtype),
                grid_spec=pl.GridSpec(
                    grid=grid,
                    in_specs=[pl.BlockSpec((tb, n_pad), lambda i, j: (i, 0)),
                              w1_spec],
                    out_specs=pl.BlockSpec((tb, tf), lambda i, j: (i, j))),
                compiler_params=pltpu.CompilerParams(
                    dimension_semantics=("parallel", "arbitrary"),
                    vmem_limit_bytes=vmem_limit),
                cost_estimate=cost,
            )(Xp, W1p)

        hid_p = _with_single_buffered_weights(call)
        if b_pad != B or f_pad != num_features:
            hid_p = hid_p[:B, :num_features]
        return hid_p

    # ------------------------------------------------------------ full forward
    cost = pl.CostEstimate(
        flops=4 * b_pad * n_pad * f_pad,
        transcendentals=b_pad * (f_pad + n_pad),
        bytes_accessed=int(itemsize * (b_pad * n_pad + 2 * n_pad * f_pad)
                           + out_itemsize * b_pad * n_pad))

    def resident_est(single=True):
        w_bufs = 1 if single else 2
        return (w_bufs * itemsize * 2 * n_pad * f_pad     # W1 + W2 resident
                + 2 * itemsize * tb * n_pad               # X blocks
                + 2 * out_itemsize * tb * n_pad           # out blocks
                + headroom)

    if resident_est() <= vmem_cap:
        # Both weights VMEM-resident (single-buffered), grid over batch only.
        Xp = pad_x(b_pad)
        kernel = functools.partial(_fwd_resident_kernel, approx=approx)

        def call(single):
            w1_spec = _weight_spec((n_pad, f_pad), lambda i: (0, 0), single)
            w2_spec = _weight_spec((f_pad, n_pad), lambda i: (0, 0), single)
            vmem_limit = int(min(max(resident_est(single), 32 << 20), vmem_cap))
            return pl.pallas_call(
                kernel,
                out_shape=jax.ShapeDtypeStruct((b_pad, n_pad), out_dtype),
                grid_spec=pl.GridSpec(
                    grid=(b_pad // tb,),
                    in_specs=[pl.BlockSpec((tb, n_pad), lambda i: (i, 0)),
                              w1_spec, w2_spec],
                    out_specs=pl.BlockSpec((tb, n_pad), lambda i: (i, 0))),
                compiler_params=pltpu.CompilerParams(
                    dimension_semantics=("parallel",),
                    vmem_limit_bytes=vmem_limit),
                cost_estimate=cost,
            )(Xp, W1p, W2p)

        out_p = _with_single_buffered_weights(call)
    else:
        # Weight-tiled fallback (v7x 64 MiB VMEM / large models): W1 stays
        # resident, W2 / output tiled over columns; hidden reused from scratch.
        # TODO(synk): if W1 alone exceeds the VMEM budget, add a K/F reduction
        # grid axis with an f32 accumulator scratch instead of shrinking tiles.
        def tiled_est(tn_, tb_, single=True):
            w1_bufs = 1 if single else 2
            return (w1_bufs * itemsize * n_pad * f_pad    # W1 resident
                    + 2 * itemsize * f_pad * tn_          # W2 column tiles
                    + 2 * itemsize * tb_ * n_pad          # X blocks
                    + 2 * out_itemsize * tb_ * tn_        # out blocks
                    + itemsize * tb_ * f_pad              # hidden scratch
                    + headroom)

        tn = min(512, n_pad)
        while tn > 128 and (n_pad % tn != 0 or tiled_est(tn, tb) > vmem_cap):
            tn -= 128
        while tb > sub and tiled_est(tn, tb) > vmem_cap:
            tb = max(sub, _round_up(tb // 2, sub))
        b_pad = _round_up(B, tb)
        Xp = pad_x(b_pad)
        kernel = functools.partial(_fwd_tiled_kernel, approx=approx)

        def call(single):
            w1_spec = _weight_spec((n_pad, f_pad), lambda i, j: (0, 0), single)
            vmem_limit = int(min(max(tiled_est(tn, tb, single), 32 << 20),
                                 vmem_cap))
            return pl.pallas_call(
                kernel,
                out_shape=jax.ShapeDtypeStruct((b_pad, n_pad), out_dtype),
                grid_spec=pltpu.PrefetchScalarGridSpec(
                    num_scalar_prefetch=0,
                    grid=(b_pad // tb, n_pad // tn),
                    in_specs=[pl.BlockSpec((tb, n_pad), lambda i, j: (i, 0)),
                              w1_spec,
                              pl.BlockSpec((f_pad, tn), lambda i, j: (0, j))],
                    out_specs=pl.BlockSpec((tb, tn), lambda i, j: (i, j)),
                    scratch_shapes=[pltpu.VMEM((tb, f_pad), compute_dtype)]),
                compiler_params=pltpu.CompilerParams(
                    dimension_semantics=("parallel", "arbitrary"),
                    vmem_limit_bytes=vmem_limit),
                cost_estimate=cost,
            )(Xp, W1p, W2p)

        out_p = _with_single_buffered_weights(call)

    if b_pad != B or n_pad != num_input:
        out_p = out_p[:B, :num_input]
    return out_p


# ---------------------------------------------------------------------------
# Pure-JAX reference (mirrors the PyTorch module exactly)
# ---------------------------------------------------------------------------
def reference_forward(X, W1, W2, mask, return_features=False):
    hidden = jax.nn.sigmoid(X @ (W1 * mask))
    if return_features:
        return hidden
    return jax.nn.sigmoid(hidden @ (W2 * mask.T))


if __name__ == "__main__":
    # Small shapes consistent with the module: batch=8, num_input=32, num_features=16
    B, num_input, num_features = 8, 32, 16

    key = jax.random.PRNGKey(0)
    k_x, k_w1, k_w2, k_m = jax.random.split(key, 4)

    # Deterministic parameter init (mirrors torch.randn(...) * 0.01)
    W1 = jax.random.normal(k_w1, (num_input, num_features), jnp.float32) * 0.01
    W2 = jax.random.normal(k_w2, (num_features, num_input), jnp.float32) * 0.01
    X = jax.random.normal(k_x, (B, num_input), jnp.float32)
    mask = (jax.random.uniform(k_m, (num_input, num_features)) > 0.5).astype(jnp.float32)

    ref_out = reference_forward(X, W1, W2, mask)
    ref_hid = reference_forward(X, W1, W2, mask, return_features=True)

    # f32 compute path (tight tolerance).
    out_f32 = jax.block_until_ready(
        autoencoder_forward(X, W1, W2, mask, use_bf16=False))
    hid_f32 = jax.block_until_ready(
        autoencoder_forward(X, W1, W2, mask, return_features=True, use_bf16=False))
    assert out_f32.shape == ref_out.shape and hid_f32.shape == ref_hid.shape
    assert jnp.allclose(out_f32, ref_out, atol=1e-5, rtol=1e-5)
    assert jnp.allclose(hid_f32, ref_hid, atol=1e-5, rtol=1e-5)

    # Default fast path: bf16 weights/activations with f32 accumulation, using
    # weights prepared once (mask/pad/cast hoisted out of the per-call path).
    prepared = prepare_weights(W1, W2, mask, use_bf16=True)
    out_bf16 = jax.block_until_ready(
        autoencoder_forward(X, prepared=prepared))
    hid_bf16 = jax.block_until_ready(
        autoencoder_forward(X, prepared=prepared, return_features=True))
    assert jnp.allclose(out_bf16, ref_out, atol=2e-2, rtol=2e-2)
    assert jnp.allclose(hid_bf16, ref_hid, atol=2e-2, rtol=2e-2)

    print("KERNEL_OK")
</pallas_src>

<mosaic_0001>
module attributes {stable_mosaic.version = 11 : i64} {
  func.func @_fwd_resident_kernel(%arg0: i32, %arg1: memref<8x128xf32, #tpu.memory_space<vmem>>, %arg2: memref<128x128xf32, #tpu.memory_space<vmem>>, %arg3: memref<128x128xf32, #tpu.memory_space<vmem>>, %arg4: memref<8x128xf32, #tpu.memory_space<vmem>>) attributes {dimension_semantics = [#tpu.dimension_semantics<parallel>], iteration_bounds = array<i64: 1>, scalar_prefetch = 0 : i64, scratch_operands = 0 : i64, tpu.core_type = #tpu.core_type<tc>, window_params = [{transform_indices = @transform_0, window_bounds = array<i64: 8, 128>}, {pipeline_mode = #tpu.pipeline_mode<synchronous>, transform_indices = @transform_1, window_bounds = array<i64: 128, 128>}, {pipeline_mode = #tpu.pipeline_mode<synchronous>, transform_indices = @transform_2, window_bounds = array<i64: 128, 128>}, {transform_indices = @transform_3, window_bounds = array<i64: 8, 128>}]} {
    %c0 = arith.constant 0 : index
    %c0_0 = arith.constant 0 : index
    %0 = vector.load %arg1[%c0, %c0_0] : memref<8x128xf32, #tpu.memory_space<vmem>>, vector<8x128xf32>
    %c0_1 = arith.constant 0 : index
    %c0_2 = arith.constant 0 : index
    %1 = vector.load %arg2[%c0_1, %c0_2] : memref<128x128xf32, #tpu.memory_space<vmem>>, vector<128x128xf32>
    %cst = arith.constant dense<0.000000e+00> : vector<8x128xf32>
    %2 = tpu.matmul %0, %1, %cst {dimension_numbers = #tpu.dot_dimension_numbers<[1], [0], [0], [1], [0, 0, 1, 1], [], []>} : vector<8x128xf32>, vector<128x128xf32>, vector<8x128xf32> -> vector<8x128xf32>
    %cst_3 = arith.constant 0.000000e+00 : f32
    %3 = vector.broadcast %cst_3 : f32 to vector<8x128xf32>
    %4 = arith.subf %3, %2 : vector<8x128xf32>
    %5 = math.exp %4 : vector<8x128xf32>
    %cst_4 = arith.constant 1.000000e+00 : f32
    %6 = vector.broadcast %cst_4 : f32 to vector<8x128xf32>
    %7 = arith.addf %6, %5 : vector<8x128xf32>
    %cst_5 = arith.constant 1.000000e+00 : f32
    %8 = vector.broadcast %cst_5 : f32 to vector<8x128xf32>
    %9 = arith.divf %8, %7 : vector<8x128xf32>
    %c0_6 = arith.constant 0 : index
    %c0_7 = arith.constant 0 : index
    %10 = vector.load %arg3[%c0_6, %c0_7] : memref<128x128xf32, #tpu.memory_space<vmem>>, vector<128x128xf32>
    %cst_8 = arith.constant dense<0.000000e+00> : vector<8x128xf32>
    %11 = tpu.matmul %9, %10, %cst_8 {dimension_numbers = #tpu.dot_dimension_numbers<[1], [0], [0], [1], [0, 0, 1, 1], [], []>} : vector<8x128xf32>, vector<128x128xf32>, vector<8x128xf32> -> vector<8x128xf32>
    %cst_9 = arith.constant 0.000000e+00 : f32
    %12 = vector.broadcast %cst_9 : f32 to vector<8x128xf32>
    %13 = arith.subf %12, %11 : vector<8x128xf32>
    %14 = math.exp %13 : vector<8x128xf32>
    %cst_10 = arith.constant 1.000000e+00 : f32
    %15 = vector.broadcast %cst_10 : f32 to vector<8x128xf32>
    %16 = arith.addf %15, %14 : vector<8x128xf32>
    %cst_11 = arith.constant 1.000000e+00 : f32
    %17 = vector.broadcast %cst_11 : f32 to vector<8x128xf32>
    %18 = arith.divf %17, %16 : vector<8x128xf32>
    %c0_12 = arith.constant 0 : index
    %c0_13 = arith.constant 0 : index
    %19 = vector.load %arg4[%c0_12, %c0_13] : memref<8x128xf32, #tpu.memory_space<vmem>>, vector<8x128xf32>
    tpu.vector_store %arg4[%c0_12, %c0_13], %18 {strides = array<i32>} : memref<8x128xf32, #tpu.memory_space<vmem>>, vector<8x128xf32>,
    return
  }
  func.func @transform_0(%arg0: i32) -> (i32, i32) {
    %c0_i32 = arith.constant 0 : i32
    %c0_i32_0 = arith.constant 0 : i32
    return %arg0, %c0_i32 : i32, i32
  }
  func.func @transform_1(%arg0: i32) -> (i32, i32) {
    %c0_i32 = arith.constant 0 : i32
    %c0_i32_0 = arith.constant 0 : i32
    %c0_i32_1 = arith.constant 0 : i32
    return %c0_i32, %c0_i32_0 : i32, i32
  }
  func.func @transform_2(%arg0: i32) -> (i32, i32) {
    %c0_i32 = arith.constant 0 : i32
    %c0_i32_0 = arith.constant 0 : i32
    %c0_i32_1 = arith.constant 0 : i32
    return %c0_i32, %c0_i32_0 : i32, i32
  }
  func.func @transform_3(%arg0: i32) -> (i32, i32) {
    %c0_i32 = arith.constant 0 : i32
    %c0_i32_0 = arith.constant 0 : i32
    return %arg0, %c0_i32 : i32, i32
  }
}

module attributes {stable_mosaic.version = 11 : i64} {
  func.func @_fwd_resident_kernel(%arg0: i32, %arg1: memref<8x128xf32, #tpu.memory_space<vmem>>, %arg2: memref<128x128xf32, #tpu.memory_space<vmem>>, %arg3: memref<128x128xf32, #tpu.memory_space<vmem>>, %arg4: memref<8x128xf32, #tpu.memory_space<vmem>>) attributes {dimension_semantics = [#tpu.dimension_semantics<parallel>], iteration_bounds = array<i64: 1>, scalar_prefetch = 0 : i64, scratch_operands = 0 : i64, tpu.core_type = #tpu.core_type<tc>, window_params = [{transform_indices = @transform_0, window_bounds = array<i64: 8, 128>}, {pipeline_mode = #tpu.pipeline_mode<synchronous>, transform_indices = @transform_1, window_bounds = array<i64: 128, 128>}, {pipeline_mode = #tpu.pipeline_mode<synchronous>, transform_indices = @transform_2, window_bounds = array<i64: 128, 128>}, {transform_indices = @transform_3, window_bounds = array<i64: 8, 128>}]} {
    %c0 = arith.constant 0 : index
    %c0_0 = arith.constant 0 : index
    %0 = vector.load %arg1[%c0, %c0_0] : memref<8x128xf32, #tpu.memory_space<vmem>>, vector<8x128xf32>
    %c0_1 = arith.constant 0 : index
    %c0_2 = arith.constant 0 : index
    %1 = vector.load %arg2[%c0_1, %c0_2] : memref<128x128xf32, #tpu.memory_space<vmem>>, vector<128x128xf32>
    %cst = arith.constant dense<0.000000e+00> : vector<8x128xf32>
    %2 = tpu.matmul %0, %1, %cst {dimension_numbers = #tpu.dot_dimension_numbers<[1], [0], [0], [1], [0, 0, 1, 1], [], []>} : vector<8x128xf32>, vector<128x128xf32>, vector<8x128xf32> -> vector<8x128xf32>
    %cst_3 = arith.constant 0.000000e+00 : f32
    %3 = vector.broadcast %cst_3 : f32 to vector<8x128xf32>
    %4 = arith.subf %3, %2 : vector<8x128xf32>
    %5 = math.exp %4 : vector<8x128xf32>
    %cst_4 = arith.constant 1.000000e+00 : f32
    %6 = vector.broadcast %cst_4 : f32 to vector<8x128xf32>
    %7 = arith.addf %6, %5 : vector<8x128xf32>
    %cst_5 = arith.constant 1.000000e+00 : f32
    %8 = vector.broadcast %cst_5 : f32 to vector<8x128xf32>
    %9 = arith.divf %8, %7 : vector<8x128xf32>
    %c0_6 = arith.constant 0 : index
    %c0_7 = arith.constant 0 : index
    %10 = vector.load %arg3[%c0_6, %c0_7] : memref<128x128xf32, #tpu.memory_space<vmem>>, vector<128x128xf32>
    %cst_8 = arith.constant dense<0.000000e+00> : vector<8x128xf32>
    %11 = tpu.matmul %9, %10, %cst_8 {dimension_numbers = #tpu.dot_dimension_numbers<[1], [0], [0], [1], [0, 0, 1, 1], [], []>} : vector<8x128xf32>, vector<128x128xf32>, vector<8x128xf32> -> vector<8x128xf32>
    %cst_9 = arith.constant 0.000000e+00 : f32
    %12 = vector.broadcast %cst_9 : f32 to vector<8x128xf32>
    %13 = arith.subf %12, %11 : vector<8x128xf32>
    %14 = math.exp %13 : vector<8x128xf32>
    %cst_10 = arith.constant 1.000000e+00 : f32
    %15 = vector.broadcast %cst_10 : f32 to vector<8x128xf32>
    %16 = arith.addf %15, %14 : vector<8x128xf32>
    %cst_11 = arith.constant 1.000000e+00 : f32
    %17 = vector.broadcast %cst_11 : f32 to vector<8x128xf32>
    %18 = arith.divf %17, %16 : vector<8x128xf32>
    %c0_12 = arith.constant 0 : index
    %c0_13 = arith.constant 0 : index
    %19 = vector.load %arg4[%c0_12, %c0_13] : memref<8x128xf32, #tpu.memory_space<vmem>>, vector<8x128xf32>
    tpu.vector_store %arg4[%c0_12, %c0_13], %18 {strides = array<i32>} : memref<8x128xf32, #tpu.memory_space<vmem>>, vector<8x128xf32>,
    return
  }
  func.func @transform_0(%arg0: i32) -> (i32, i32) {
    %c0_i32 = arith.constant 0 : i32
    %c0_i32_0 = arith.constant 0 : i32
    return %arg0, %c0_i32 : i32, i32
  }
  func.func @transform_1(%arg0: i32) -> (i32, i32) {
    %c0_i32 = arith.constant 0 : i32
    %c0_i32_0 = arith.constant 0 : i32
    %c0_i32_1 = arith.constant 0 : i32
    return %c0_i32, %c0_i32_0 : i32, i32
  }
  func.func @transform_2(%arg0: i32) -> (i32, i32) {
    %c0_i32 = arith.constant 0 : i32
    %c0_i32_0 = arith.constant 0 : i32
    %c0_i32_1 = arith.constant 0 : i32
    return %c0_i32, %c0_i32_0 : i32, i32
  }
  func.func @transform_3(%arg0: i32) -> (i32, i32) {
    %c0_i32 = arith.constant 0 : i32
    %c0_i32_0 = arith.constant 0 : i32
    return %arg0, %c0_i32 : i32, i32
  }
}

</mosaic_0001>

<llo_original>
// kernel: tpu_custom_call.1
$region0: #{tpu_custom_call.1}
  #allocation0 [shape = 'u32[]', space=smem, size = 0x4, offset = 0x4, fixed_abs, tag = 'smem constant byte address 0x4 - core index']
  #allocation1 [shape = 'u32[144,128]{1,0:T(1,128)}', space=vmem, size = 0x12000, scoped, tag = 'internal scratch']
  %s0 = inlined_call_operand.hbm [shape: f32[8,128], index: 0, kind: input, shape index: {}]
  %s1 = inlined_call_operand.hbm [shape: f32[128,128], index: 1, kind: input, shape index: {}]
  %s2 = inlined_call_operand.hbm [shape: f32[128,128], index: 2, kind: input, shape index: {}]
  %s3 = inlined_call_operand.hbm [shape: f32[8,128], index: 3, kind: output, shape index: {}]
  %s4 = sld [smem:[#allocation0]]
  $region34: #{tpu_custom_call.1} parent=0
    _
  %s6 = ssub.s32 1, %s4
  %s7 = scalar_select 0, %s6, %s4
  $region1: #{tpu_custom_call.1} parent=0
    #allocation2 [shape = 'u8[4096]{0}', space=vmem, size = 0x1000, scoped, tag = 'input window, operand 0, single buffered']
    #allocation3 [shape = 's32[1]{0}', space=sflag, size = 0x4, scoped, tag = 'scoped memory for tpu_custom_call.1']
    #allocation4 [shape = 's32[1]{0}', space=sflag, size = 0x4, scoped, tag = 'scoped memory for tpu_custom_call.1']
    #allocation5 [shape = 'u8[65536]{0}', space=vmem, size = 0x10000, scoped, tag = 'input window, operand 1, single buffered']
    #allocation6 [shape = 's32[1]{0}', space=sflag, size = 0x4, scoped, tag = 'scoped memory for tpu_custom_call.1']
    #allocation7 [shape = 'u8[65536]{0}', space=vmem, size = 0x10000, scoped, tag = 'input window, operand 2, single buffered']
    #allocation8 [shape = 'u8[4096]{0}', space=vmem, size = 0x1000, scoped, tag = 'output window, operand 0, single buffered']
    %8 = vsyncpa [#allocation3], 0
    %9 = vsyncpa [#allocation6], 0
    %10 = vsyncpa [#allocation4], 0
    // Predicated region
    $region2: #{tpu_custom_call.1} parent=1 // pred_check
      _
    $region3: #{tpu_custom_call.1} parent=1 // pred_check_branch
      %12 = sbr.rel (0) target = $region5
    $region4: #{tpu_custom_call.1} parent=1 // pred_region
      %s14 = ssub.s32 128, 128
      %15 = vsyncadd [#allocation3], %s14
      %s17 = sshll.u32 [#allocation2], 4
      %s18 = int_to_ptr.vmem [resolvable:$true] %s17
      %20 = dma.hbm_to_vmem [thread:$0]  %s0, 128, %s18, [#allocation3]
    $region5: #{tpu_custom_call.1} parent=1 // pred_fallthru
      _
    // Predicated region
    $region6: #{tpu_custom_call.1} parent=1 // pred_check
      _
    $region7: #{tpu_custom_call.1} parent=1 // pred_check_branch
      %22 = sbr.rel (0) target = $region9
    $region8: #{tpu_custom_call.1} parent=1 // pred_region
      %s24 = ssub.s32 2048, 2048
      %25 = vsyncadd [#allocation6], %s24
      %s26 = sshll.u32 [#allocation5], 4
      %s27 = int_to_ptr.vmem [resolvable:$true] %s26
      %32 = dma.hbm_to_vmem [thread:$0]  %s1, 2048, %s27, [#allocation6], 128, 128, 8
    $region9: #{tpu_custom_call.1} parent=1 // pred_fallthru
      _
    // Predicated region
    $region10: #{tpu_custom_call.1} parent=1 // pred_check
      _
    $region11: #{tpu_custom_call.1} parent=1 // pred_check_branch
      %34 = sbr.rel (0) target = $region13
    $region12: #{tpu_custom_call.1} parent=1 // pred_region
      %s36 = ssub.s32 2048, 2048
      %37 = vsyncadd [#allocation6], %s36
      %s38 = sshll.u32 [#allocation7], 4
      %s39 = int_to_ptr.vmem [resolvable:$true] %s38
      %44 = dma.hbm_to_vmem [thread:$0]  %s2, 2048, %s39, [#allocation6], 128, 128, 8
    $region13: #{tpu_custom_call.1} parent=1 // pred_fallthru
      _
    // Predicated region
    $region14: #{tpu_custom_call.1} parent=1 // pred_check
      _
    $region15: #{tpu_custom_call.1} parent=1 // pred_check_branch
      %46 = sbr.rel (0) target = $region17
    $region16: #{tpu_custom_call.1} parent=1 // pred_region
      %47 = dma.done [#allocation3], 128
    $region17: #{tpu_custom_call.1} parent=1 // pred_fallthru
      _
    // Predicated region
    $region18: #{tpu_custom_call.1} parent=1 // pred_check
      _
    $region19: #{tpu_custom_call.1} parent=1 // pred_check_branch
      %49 = sbr.rel (0) target = $region21
    $region20: #{tpu_custom_call.1} parent=1 // pred_region
      %50 = dma.done [#allocation6], 2048
    $region21: #{tpu_custom_call.1} parent=1 // pred_fallthru
      _
    // Predicated region
    $region22: #{tpu_custom_call.1} parent=1 // pred_check
      _
    $region23: #{tpu_custom_call.1} parent=1 // pred_check_branch
      %52 = sbr.rel (0) target = $region25
    $region24: #{tpu_custom_call.1} parent=1 // pred_region
      %53 = dma.done [#allocation6], 2048
    $region25: #{tpu_custom_call.1} parent=1 // pred_fallthru
      _
    %v54 = vld [vmem:[#allocation2] sm:$0xff]
    %v55 = vld [vmem:[#allocation5] sm:$0xff]
    %v56 = vld [vmem:[#allocation5 + $0x8] sm:$0xff]
    %v57 = vld [vmem:[#allocation5 + $0x10] sm:$0xff]
    %v58 = vld [vmem:[#allocation5 + $0x18] sm:$0xff]
    %v59 = vld [vmem:[#allocation5 + $0x20] sm:$0xff]
    %v60 = vld [vmem:[#allocation5 + $0x28] sm:$0xff]
    %v61 = vld [vmem:[#allocation5 + $0x30] sm:$0xff]
    %v62 = vld [vmem:[#allocation5 + $0x38] sm:$0xff]
    %v63 = vld [vmem:[#allocation5 + $0x40] sm:$0xff]
    %v64 = vld [vmem:[#allocation5 + $0x48] sm:$0xff]
    %v65 = vld [vmem:[#allocation5 + $0x50] sm:$0xff]
    %v66 = vld [vmem:[#allocation5 + $0x58] sm:$0xff]
    %v67 = vld [vmem:[#allocation5 + $0x60] sm:$0xff]
    %v68 = vld [vmem:[#allocation5 + $0x68] sm:$0xff]
    %v69 = vld [vmem:[#allocation5 + $0x70] sm:$0xff]
    %v70 = vld [vmem:[#allocation5 + $0x78] sm:$0xff]
    %71 = vmatprep.subr.mxu0 0.0
    %72 = vmatpush1.msra.mxu0 %v55
    %73 = vmatprep.subr.mxu0 0.0
    %74 = vmatpush1.msra.mxu0 %v56
    %75 = vmatprep.subr.mxu0 0.0
    %76 = vmatpush1.msra.mxu0 %v57
    %77 = vmatprep.subr.mxu0 0.0
    %78 = vmatpush1.msra.mxu0 %v58
    %79 = vmatprep.subr.mxu0 0.0
    %80 = vmatpush1.msra.mxu0 %v59
    %81 = vmatprep.subr.mxu0 0.0
    %82 = vmatpush1.msra.mxu0 %v60
    %83 = vmatprep.subr.mxu0 0.0
    %84 = vmatpush1.msra.mxu0 %v61
    %85 = vmatprep.subr.mxu0 0.0
    %86 = vmatpush1.msra.mxu0 %v62
    %87 = vmatprep.subr.mxu0 0.0
    %88 = vmatpush1.msra.mxu0 %v63
    %89 = vmatprep.subr.mxu0 0.0
    %90 = vmatpush1.msra.mxu0 %v64
    %91 = vmatprep.subr.mxu0 0.0
    %92 = vmatpush1.msra.mxu0 %v65
    %93 = vmatprep.subr.mxu0 0.0
    %94 = vmatpush1.msra.mxu0 %v66
    %95 = vmatprep.subr.mxu0 0.0
    %96 = vmatpush1.msra.mxu0 %v67
    %97 = vmatprep.subr.mxu0 0.0
    %98 = vmatpush1.msra.mxu0 %v68
    %99 = vmatprep.subr.mxu0 0.0
    %100 = vmatpush1.msra.mxu0 %v69
    %101 = vmatprep.subr.mxu0 0.0
    %102 = vmatpush1.msra.mxu0 %v70
    %103 = vmatprep.subr.mxu0 0.0
    %104 = vmatpush1.msra.mxu0 0.0
    %105 = vmatprep.subr.mxu0 0.0
    %106 = vmatpush1.msra.mxu0 0.0
    %107 = vmatprep.subr.mxu0 0.0
    %108 = vmatpush1.msra.mxu0 0.0
    %109 = vmatprep.subr.mxu0 0.0
    %110 = vmatpush1.msra.mxu0 0.0
    %111 = vmatprep.subr.mxu0 0.0
    %112 = vmatpush1.msra.mxu0 0.0
    %113 = vmatprep.subr.mxu0 0.0
    %114 = vmatpush1.msra.mxu0 0.0
    %115 = vmatprep.subr.mxu0 0.0
    %116 = vmatpush1.msra.mxu0 0.0
    %117 = vmatprep.subr.mxu0 0.0
    %118 = vmatpush1.msra.mxu0 0.0
    %119 = vmatprep.subr.mxu0 0.0
    %120 = vmatpush1.msra.mxu0 0.0
    %121 = vmatprep.subr.mxu0 0.0
    %122 = vmatpush1.msra.mxu0 0.0
    %123 = vmatprep.subr.mxu0 0.0
    %124 = vmatpush1.msra.mxu0 0.0
    %125 = vmatprep.subr.mxu0 0.0
    %126 = vmatpush1.msra.mxu0 0.0
    %127 = vmatprep.subr.mxu0 0.0
    %128 = vmatpush1.msra.mxu0 0.0
    %129 = vmatprep.subr.mxu0 0.0
    %130 = vmatpush1.msra.mxu0 0.0
    %131 = vmatprep.subr.mxu0 0.0
    %132 = vmatpush1.msra.mxu0 0.0
    %133 = vmatprep.subr.mxu0 0.0
    %134 = vmatpush1.msra.mxu0 0.0
    %135 = vmatprep.mubr.f32.mxu0 0.0
    %136 = vmatmul.mubr.f32.gmra.mrb[0].mxu0 %v54
    %v137 = vpop.f32.mrb[0].mxu0
    %v138 = vadd.f32 0.0, %v137
    %v139 = vpop.f32.mrb[0].mxu0
    %140 = vdwg.mxu0
    %v141 = vsub.f32 0.0, %v138
    %v142 = vmul.f32 %v141, 1.442695
    %v143 = vpow.pop %v142
    %v144 = vadd.f32 %v143, 1.0
    %v145 = vrcp.pop %v144
    %v146 = vmul.f32 1.0, %v145
    %v147 = vld [vmem:[#allocation7] sm:$0xff]
    %v148 = vld [vmem:[#allocation7 + $0x8] sm:$0xff]
    %v149 = vld [vmem:[#allocation7 + $0x10] sm:$0xff]
    %v150 = vld [vmem:[#allocation7 + $0x18] sm:$0xff]
    %v151 = vld [vmem:[#allocation7 + $0x20] sm:$0xff]
    %v152 = vld [vmem:[#allocation7 + $0x28] sm:$0xff]
    %v153 = vld [vmem:[#allocation7 + $0x30] sm:$0xff]
    %v154 = vld [vmem:[#allocation7 + $0x38] sm:$0xff]
    %v155 = vld [vmem:[#allocation7 + $0x40] sm:$0xff]
    %v156 = vld [vmem:[#allocation7 + $0x48] sm:$0xff]
    %v157 = vld [vmem:[#allocation7 + $0x50] sm:$0xff]
    %v158 = vld [vmem:[#allocation7 + $0x58] sm:$0xff]
    %v159 = vld [vmem:[#allocation7 + $0x60] sm:$0xff]
    %v160 = vld [vmem:[#allocation7 + $0x68] sm:$0xff]
    %v161 = vld [vmem:[#allocation7 + $0x70] sm:$0xff]
    %v162 = vld [vmem:[#allocation7 + $0x78] sm:$0xff]
    %163 = vmatprep.subr.mxu0 0.0
    %164 = vmatpush1.msra.mxu0 %v147
    %165 = vmatprep.subr.mxu0 0.0
    %166 = vmatpush1.msra.mxu0 %v148
    %167 = vmatprep.subr.mxu0 0.0
    %168 = vmatpush1.msra.mxu0 %v149
    %169 = vmatprep.subr.mxu0 0.0
    %170 = vmatpush1.msra.mxu0 %v150
    %171 = vmatprep.subr.mxu0 0.0
    %172 = vmatpush1.msra.mxu0 %v151
    %173 = vmatprep.subr.mxu0 0.0
    %174 = vmatpush1.msra.mxu0 %v152
    %175 = vmatprep.subr.mxu0 0.0
    %176 = vmatpush1.msra.mxu0 %v153
    %177 = vmatprep.subr.mxu0 0.0
    %178 = vmatpush1.msra.mxu0 %v154
    %179 = vmatprep.subr.mxu0 0.0
    %180 = vmatpush1.msra.mxu0 %v155
    %181 = vmatprep.subr.mxu0 0.0
    %182 = vmatpush1.msra.mxu0 %v156
    %183 = vmatprep.subr.mxu0 0.0
    %184 = vmatpush1.msra.mxu0 %v157
    %185 = vmatprep.subr.mxu0 0.0
    %186 = vmatpush1.msra.mxu0 %v158
    %187 = vmatprep.subr.mxu0 0.0
    %188 = vmatpush1.msra.mxu0 %v159
    %189 = vmatprep.subr.mxu0 0.0
    %190 = vmatpush1.msra.mxu0 %v160
    %191 = vmatprep.subr.mxu0 0.0
    %192 = vmatpush1.msra.mxu0 %v161
    %193 = vmatprep.subr.mxu0 0.0
    %194 = vmatpush1.msra.mxu0 %v162
    %195 = vmatprep.subr.mxu0 0.0
    %196 = vmatpush1.msra.mxu0 0.0
    %197 = vmatprep.subr.mxu0 0.0
    %198 = vmatpush1.msra.mxu0 0.0
    %199 = vmatprep.subr.mxu0 0.0
    %200 = vmatpush1.msra.mxu0 0.0
    %201 = vmatprep.subr.mxu0 0.0
    %202 = vmatpush1.msra.mxu0 0.0
    %203 = vmatprep.subr.mxu0 0.0
    %204 = vmatpush1.msra.mxu0 0.0
    %205 = vmatprep.subr.mxu0 0.0
    %206 = vmatpush1.msra.mxu0 0.0
    %207 = vmatprep.subr.mxu0 0.0
    %208 = vmatpush1.msra.mxu0 0.0
    %209 = vmatprep.subr.mxu0 0.0
    %210 = vmatpush1.msra.mxu0 0.0
    %211 = vmatprep.subr.mxu0 0.0
    %212 = vmatpush1.msra.mxu0 0.0
    %213 = vmatprep.subr.mxu0 0.0
    %214 = vmatpush1.msra.mxu0 0.0
    %215 = vmatprep.subr.mxu0 0.0
    %216 = vmatpush1.msra.mxu0 0.0
    %217 = vmatprep.subr.mxu0 0.0
    %218 = vmatpush1.msra.mxu0 0.0
    %219 = vmatprep.subr.mxu0 0.0
    %220 = vmatpush1.msra.mxu0 0.0
    %221 = vmatprep.subr.mxu0 0.0
    %222 = vmatpush1.msra.mxu0 0.0
    %223 = vmatprep.subr.mxu0 0.0
    %224 = vmatpush1.msra.mxu0 0.0
    %225 = vmatprep.subr.mxu0 0.0
    %226 = vmatpush1.msra.mxu0 0.0
    %227 = vmatprep.mubr.f32.mxu0 0.0
    %228 = vmatmul.mubr.f32.gmra.mrb[0].mxu0 %v146
    %v229 = vpop.f32.mrb[0].mxu0
    %v230 = vadd.f32 0.0, %v229
    %v231 = vpop.f32.mrb[0].mxu0
    %232 = vdwg.mxu0
    %v233 = vsub.f32 0.0, %v230
    %v234 = vmul.f32 %v233, 1.442695
    %v235 = vpow.pop %v234
    %v236 = vadd.f32 %v235, 1.0
    %v237 = vrcp.pop %v236
    %v238 = vmul.f32 1.0, %v237
    %239 = vst [vmem:[#allocation8] sm:$0xff] %v238
    // Predicated region
    $region26: #{tpu_custom_call.1} parent=1 // pred_check
      _
    $region27: #{tpu_custom_call.1} parent=1 // pred_check_branch
      %241 = sbr.rel (0) target = $region29
    $region28: #{tpu_custom_call.1} parent=1 // pred_region
      %s243 = ssub.s32 128, 128
      %244 = vsyncadd [#allocation4], %s243
      %s246 = sshll.u32 [#allocation8], 4
      %s247 = int_to_ptr.vmem [resolvable:$true] %s246
      %249 = dma.vmem_to_hbm [thread:$0]  %s247, 128, %s3, [#allocation4]
    $region29: #{tpu_custom_call.1} parent=1 // pred_fallthru
      _
    // Predicated region
    $region30: #{tpu_custom_call.1} parent=1 // pred_check
      _
    $region31: #{tpu_custom_call.1} parent=1 // pred_check_branch
      %251 = sbr.rel (0) target = $region33
    $region32: #{tpu_custom_call.1} parent=1 // pred_region
      %252 = dma.done [#allocation4], 128
    $region33: #{tpu_custom_call.1} parent=1 // pred_fallthru
      _
    %253 = vsyncpa [#allocation3], 1
    %254 = vsyncpa [#allocation6], 1
    %255 = vsyncpa [#allocation4], 1

// kernel: tpu_custom_call.1
$region0: #{tpu_custom_call.1}
  #allocation0 [shape = 'u32[]', space=smem, size = 0x4, offset = 0x4, fixed_abs, tag = 'smem constant byte address 0x4 - core index']
  #allocation1 [shape = 'u32[144,128]{1,0:T(1,128)}', space=vmem, size = 0x12000, scoped, tag = 'internal scratch']
  %s0 = inlined_call_operand.hbm [shape: f32[8,128], index: 0, kind: input, shape index: {}]
  %s1 = inlined_call_operand.hbm [shape: f32[128,128], index: 1, kind: input, shape index: {}]
  %s2 = inlined_call_operand.hbm [shape: f32[128,128], index: 2, kind: input, shape index: {}]
  %s3 = inlined_call_operand.hbm [shape: f32[8,128], index: 3, kind: output, shape index: {}]
  %s4 = sld [smem:[#allocation0]]
  $region34: #{tpu_custom_call.1} parent=0
    _
  %s6 = ssub.s32 1, %s4
  %s7 = scalar_select 0, %s6, %s4
  $region1: #{tpu_custom_call.1} parent=0
    #allocation2 [shape = 'u8[4096]{0}', space=vmem, size = 0x1000, scoped, tag = 'input window, operand 0, single buffered']
    #allocation3 [shape = 's32[1]{0}', space=sflag, size = 0x4, scoped, tag = 'scoped memory for tpu_custom_call.1']
    #allocation4 [shape = 's32[1]{0}', space=sflag, size = 0x4, scoped, tag = 'scoped memory for tpu_custom_call.1']
    #allocation5 [shape = 'u8[65536]{0}', space=vmem, size = 0x10000, scoped, tag = 'input window, operand 1, single buffered']
    #allocation6 [shape = 's32[1]{0}', space=sflag, size = 0x4, scoped, tag = 'scoped memory for tpu_custom_call.1']
    #allocation7 [shape = 'u8[65536]{0}', space=vmem, size = 0x10000, scoped, tag = 'input window, operand 2, single buffered']
    #allocation8 [shape = 'u8[4096]{0}', space=vmem, size = 0x1000, scoped, tag = 'output window, operand 0, single buffered']
    %8 = vsyncpa [#allocation3], 0
    %9 = vsyncpa [#allocation6], 0
    %10 = vsyncpa [#allocation4], 0
    // Predicated region
    $region2: #{tpu_custom_call.1} parent=1 // pred_check
      _
    $region3: #{tpu_custom_call.1} parent=1 // pred_check_branch
      %12 = sbr.rel (0) target = $region5
    $region4: #{tpu_custom_call.1} parent=1 // pred_region
      %s14 = ssub.s32 128, 128
      %15 = vsyncadd [#allocation3], %s14
      %s17 = sshll.u32 [#allocation2], 4
      %s18 = int_to_ptr.vmem [resolvable:$true] %s17
      %20 = dma.hbm_to_vmem [thread:$0]  %s0, 128, %s18, [#allocation3]
    $region5: #{tpu_custom_call.1} parent=1 // pred_fallthru
      _
    // Predicated region
    $region6: #{tpu_custom_call.1} parent=1 // pred_check
      _
    $region7: #{tpu_custom_call.1} parent=1 // pred_check_branch
      %22 = sbr.rel (0) target = $region9
    $region8: #{tpu_custom_call.1} parent=1 // pred_region
      %s24 = ssub.s32 2048, 2048
      %25 = vsyncadd [#allocation6], %s24
      %s26 = sshll.u32 [#allocation5], 4
      %s27 = int_to_ptr.vmem [resolvable:$true] %s26
      %32 = dma.hbm_to_vmem [thread:$0]  %s1, 2048, %s27, [#allocation6], 128, 128, 8
    $region9: #{tpu_custom_call.1} parent=1 // pred_fallthru
      _
    // Predicated region
    $region10: #{tpu_custom_call.1} parent=1 // pred_check
      _
    $region11: #{tpu_custom_call.1} parent=1 // pred_check_branch
      %34 = sbr.rel (0) target = $region13
    $region12: #{tpu_custom_call.1} parent=1 // pred_region
      %s36 = ssub.s32 2048, 2048
      %37 = vsyncadd [#allocation6], %s36
      %s38 = sshll.u32 [#allocation7], 4
      %s39 = int_to_ptr.vmem [resolvable:$true] %s38
      %44 = dma.hbm_to_vmem [thread:$0]  %s2, 2048, %s39, [#allocation6], 128, 128, 8
    $region13: #{tpu_custom_call.1} parent=1 // pred_fallthru
      _
    // Predicated region
    $region14: #{tpu_custom_call.1} parent=1 // pred_check
      _
    $region15: #{tpu_custom_call.1} parent=1 // pred_check_branch
      %46 = sbr.rel (0) target = $region17
    $region16: #{tpu_custom_call.1} parent=1 // pred_region
      %47 = dma.done [#allocation3], 128
    $region17: #{tpu_custom_call.1} parent=1 // pred_fallthru
      _
    // Predicated region
    $region18: #{tpu_custom_call.1} parent=1 // pred_check
      _
    $region19: #{tpu_custom_call.1} parent=1 // pred_check_branch
      %49 = sbr.rel (0) target = $region21
    $region20: #{tpu_custom_call.1} parent=1 // pred_region
      %50 = dma.done [#allocation6], 2048
    $region21: #{tpu_custom_call.1} parent=1 // pred_fallthru
      _
    // Predicated region
    $region22: #{tpu_custom_call.1} parent=1 // pred_check
      _
    $region23: #{tpu_custom_call.1} parent=1 // pred_check_branch
      %52 = sbr.rel (0) target = $region25
    $region24: #{tpu_custom_call.1} parent=1 // pred_region
      %53 = dma.done [#allocation6], 2048
    $region25: #{tpu_custom_call.1} parent=1 // pred_fallthru
      _
    %v54 = vld [vmem:[#allocation2] sm:$0xff]
    %v55 = vld [vmem:[#allocation5] sm:$0xff]
    %v56 = vld [vmem:[#allocation5 + $0x8] sm:$0xff]
    %v57 = vld [vmem:[#allocation5 + $0x10] sm:$0xff]
    %v58 = vld [vmem:[#allocation5 + $0x18] sm:$0xff]
    %v59 = vld [vmem:[#allocation5 + $0x20] sm:$0xff]
    %v60 = vld [vmem:[#allocation5 + $0x28] sm:$0xff]
    %v61 = vld [vmem:[#allocation5 + $0x30] sm:$0xff]
    %v62 = vld [vmem:[#allocation5 + $0x38] sm:$0xff]
    %v63 = vld [vmem:[#allocation5 + $0x40] sm:$0xff]
    %v64 = vld [vmem:[#allocation5 + $0x48] sm:$0xff]
    %v65 = vld [vmem:[#allocation5 + $0x50] sm:$0xff]
    %v66 = vld [vmem:[#allocation5 + $0x58] sm:$0xff]
    %v67 = vld [vmem:[#allocation5 + $0x60] sm:$0xff]
    %v68 = vld [vmem:[#allocation5 + $0x68] sm:$0xff]
    %v69 = vld [vmem:[#allocation5 + $0x70] sm:$0xff]
    %v70 = vld [vmem:[#allocation5 + $0x78] sm:$0xff]
    %71 = vmatprep.subr.mxu0 0.0
    %72 = vmatpush1.msra.mxu0 %v55
    %73 = vmatprep.subr.mxu0 0.0
    %74 = vmatpush1.msra.mxu0 %v56
    %75 = vmatprep.subr.mxu0 0.0
    %76 = vmatpush1.msra.mxu0 %v57
    %77 = vmatprep.subr.mxu0 0.0
    %78 = vmatpush1.msra.mxu0 %v58
    %79 = vmatprep.subr.mxu0 0.0
    %80 = vmatpush1.msra.mxu0 %v59
    %81 = vmatprep.subr.mxu0 0.0
    %82 = vmatpush1.msra.mxu0 %v60
    %83 = vmatprep.subr.mxu0 0.0
    %84 = vmatpush1.msra.mxu0 %v61
    %85 = vmatprep.subr.mxu0 0.0
    %86 = vmatpush1.msra.mxu0 %v62
    %87 = vmatprep.subr.mxu0 0.0
    %88 = vmatpush1.msra.mxu0 %v63
    %89 = vmatprep.subr.mxu0 0.0
    %90 = vmatpush1.msra.mxu0 %v64
    %91 = vmatprep.subr.mxu0 0.0
    %92 = vmatpush1.msra.mxu0 %v65
    %93 = vmatprep.subr.mxu0 0.0
    %94 = vmatpush1.msra.mxu0 %v66
    %95 = vmatprep.subr.mxu0 0.0
    %96 = vmatpush1.msra.mxu0 %v67
    %97 = vmatprep.subr.mxu0 0.0
    %98 = vmatpush1.msra.mxu0 %v68
    %99 = vmatprep.subr.mxu0 0.0
    %100 = vmatpush1.msra.mxu0 %v69
    %101 = vmatprep.subr.mxu0 0.0
    %102 = vmatpush1.msra.mxu0 %v70
    %103 = vmatprep.subr.mxu0 0.0
    %104 = vmatpush1.msra.mxu0 0.0
    %105 = vmatprep.subr.mxu0 0.0
    %106 = vmatpush1.msra.mxu0 0.0
    %107 = vmatprep.subr.mxu0 0.0
    %108 = vmatpush1.msra.mxu0 0.0
    %109 = vmatprep.subr.mxu0 0.0
    %110 = vmatpush1.msra.mxu0 0.0
    %111 = vmatprep.subr.mxu0 0.0
    %112 = vmatpush1.msra.mxu0 0.0
    %113 = vmatprep.subr.mxu0 0.0
    %114 = vmatpush1.msra.mxu0 0.0
    %115 = vmatprep.subr.mxu0 0.0
    %116 = vmatpush1.msra.mxu0 0.0
    %117 = vmatprep.subr.mxu0 0.0
    %118 = vmatpush1.msra.mxu0 0.0
    %119 = vmatprep.subr.mxu0 0.0
    %120 = vmatpush1.msra.mxu0 0.0
    %121 = vmatprep.subr.mxu0 0.0
    %122 = vmatpush1.msra.mxu0 0.0
    %123 = vmatprep.subr.mxu0 0.0
    %124 = vmatpush1.msra.mxu0 0.0
    %125 = vmatprep.subr.mxu0 0.0
    %126 = vmatpush1.msra.mxu0 0.0
    %127 = vmatprep.subr.mxu0 0.0
    %128 = vmatpush1.msra.mxu0 0.0
    %129 = vmatprep.subr.mxu0 0.0
    %130 = vmatpush1.msra.mxu0 0.0
    %131 = vmatprep.subr.mxu0 0.0
    %132 = vmatpush1.msra.mxu0 0.0
    %133 = vmatprep.subr.mxu0 0.0
    %134 = vmatpush1.msra.mxu0 0.0
    %135 = vmatprep.mubr.f32.mxu0 0.0
    %136 = vmatmul.mubr.f32.gmra.mrb[0].mxu0 %v54
    %v137 = vpop.f32.mrb[0].mxu0
    %v138 = vadd.f32 0.0, %v137
    %v139 = vpop.f32.mrb[0].mxu0
    %140 = vdwg.mxu0
    %v141 = vsub.f32 0.0, %v138
    %v142 = vmul.f32 %v141, 1.442695
    %v143 = vpow.pop %v142
    %v144 = vadd.f32 %v143, 1.0
    %v145 = vrcp.pop %v144
    %v146 = vmul.f32 1.0, %v145
    %v147 = vld [vmem:[#allocation7] sm:$0xff]
    %v148 = vld [vmem:[#allocation7 + $0x8] sm:$0xff]
    %v149 = vld [vmem:[#allocation7 + $0x10] sm:$0xff]
    %v150 = vld [vmem:[#allocation7 + $0x18] sm:$0xff]
    %v151 = vld [vmem:[#allocation7 + $0x20] sm:$0xff]
    %v152 = vld [vmem:[#allocation7 + $0x28] sm:$0xff]
    %v153 = vld [vmem:[#allocation7 + $0x30] sm:$0xff]
    %v154 = vld [vmem:[#allocation7 + $0x38] sm:$0xff]
    %v155 = vld [vmem:[#allocation7 + $0x40] sm:$0xff]
    %v156 = vld [vmem:[#allocation7 + $0x48] sm:$0xff]
    %v157 = vld [vmem:[#allocation7 + $0x50] sm:$0xff]
    %v158 = vld [vmem:[#allocation7 + $0x58] sm:$0xff]
    %v159 = vld [vmem:[#allocation7 + $0x60] sm:$0xff]
    %v160 = vld [vmem:[#allocation7 + $0x68] sm:$0xff]
    %v161 = vld [vmem:[#allocation7 + $0x70] sm:$0xff]
    %v162 = vld [vmem:[#allocation7 + $0x78] sm:$0xff]
    %163 = vmatprep.subr.mxu0 0.0
    %164 = vmatpush1.msra.mxu0 %v147
    %165 = vmatprep.subr.mxu0 0.0
    %166 = vmatpush1.msra.mxu0 %v148
    %167 = vmatprep.subr.mxu0 0.0
    %168 = vmatpush1.msra.mxu0 %v149
    %169 = vmatprep.subr.mxu0 0.0
    %170 = vmatpush1.msra.mxu0 %v150
    %171 = vmatprep.subr.mxu0 0.0
    %172 = vmatpush1.msra.mxu0 %v151
    %173 = vmatprep.subr.mxu0 0.0
    %174 = vmatpush1.msra.mxu0 %v152
    %175 = vmatprep.subr.mxu0 0.0
    %176 = vmatpush1.msra.mxu0 %v153
    %177 = vmatprep.subr.mxu0 0.0
    %178 = vmatpush1.msra.mxu0 %v154
    %179 = vmatprep.subr.mxu0 0.0
    %180 = vmatpush1.msra.mxu0 %v155
    %181 = vmatprep.subr.mxu0 0.0
    %182 = vmatpush1.msra.mxu0 %v156
    %183 = vmatprep.subr.mxu0 0.0
    %184 = vmatpush1.msra.mxu0 %v157
    %185 = vmatprep.subr.mxu0 0.0
    %186 = vmatpush1.msra.mxu0 %v158
    %187 = vmatprep.subr.mxu0 0.0
    %188 = vmatpush1.msra.mxu0 %v159
    %189 = vmatprep.subr.mxu0 0.0
    %190 = vmatpush1.msra.mxu0 %v160
    %191 = vmatprep.subr.mxu0 0.0
    %192 = vmatpush1.msra.mxu0 %v161
    %193 = vmatprep.subr.mxu0 0.0
    %194 = vmatpush1.msra.mxu0 %v162
    %195 = vmatprep.subr.mxu0 0.0
    %196 = vmatpush1.msra.mxu0 0.0
    %197 = vmatprep.subr.mxu0 0.0
    %198 = vmatpush1.msra.mxu0 0.0
    %199 = vmatprep.subr.mxu0 0.0
    %200 = vmatpush1.msra.mxu0 0.0
    %201 = vmatprep.subr.mxu0 0.0
    %202 = vmatpush1.msra.mxu0 0.0
    %203 = vmatprep.subr.mxu0 0.0
    %204 = vmatpush1.msra.mxu0 0.0
    %205 = vmatprep.subr.mxu0 0.0
    %206 = vmatpush1.msra.mxu0 0.0
    %207 = vmatprep.subr.mxu0 0.0
    %208 = vmatpush1.msra.mxu0 0.0
    %209 = vmatprep.subr.mxu0 0.0
    %210 = vmatpush1.msra.mxu0 0.0
    %211 = vmatprep.subr.mxu0 0.0
    %212 = vmatpush1.msra.mxu0 0.0
    %213 = vmatprep.subr.mxu0 0.0
    %214 = vmatpush1.msra.mxu0 0.0
    %215 = vmatprep.subr.mxu0 0.0
    %216 = vmatpush1.msra.mxu0 0.0
    %217 = vmatprep.subr.mxu0 0.0
    %218 = vmatpush1.msra.mxu0 0.0
    %219 = vmatprep.subr.mxu0 0.0
    %220 = vmatpush1.msra.mxu0 0.0
    %221 = vmatprep.subr.mxu0 0.0
    %222 = vmatpush1.msra.mxu0 0.0
    %223 = vmatprep.subr.mxu0 0.0
    %224 = vmatpush1.msra.mxu0 0.0
    %225 = vmatprep.subr.mxu0 0.0
    %226 = vmatpush1.msra.mxu0 0.0
    %227 = vmatprep.mubr.f32.mxu0 0.0
    %228 = vmatmul.mubr.f32.gmra.mrb[0].mxu0 %v146
    %v229 = vpop.f32.mrb[0].mxu0
    %v230 = vadd.f32 0.0, %v229
    %v231 = vpop.f32.mrb[0].mxu0
    %232 = vdwg.mxu0
    %v233 = vsub.f32 0.0, %v230
    %v234 = vmul.f32 %v233, 1.442695
    %v235 = vpow.pop %v234
    %v236 = vadd.f32 %v235, 1.0
    %v237 = vrcp.pop %v236
    %v238 = vmul.f32 1.0, %v237
    %239 = vst [vmem:[#allocation8] sm:$0xff] %v238
    // Predicated region
    $region26: #{tpu_custom_call.1} parent=1 // pred_check
      _
    $region27: #{tpu_custom_call.1} parent=1 // pred_check_branch
      %241 = sbr.rel (0) target = $region29
    $region28: #{tpu_custom_call.1} parent=1 // pred_region
      %s243 = ssub.s32 128, 128
      %244 = vsyncadd [#allocation4], %s243
      %s246 = sshll.u32 [#allocation8], 4
      %s247 = int_to_ptr.vmem [resolvable:$true] %s246
      %249 = dma.vmem_to_hbm [thread:$0]  %s247, 128, %s3, [#allocation4]
    $region29: #{tpu_custom_call.1} parent=1 // pred_fallthru
      _
    // Predicated region
    $region30: #{tpu_custom_call.1} parent=1 // pred_check
      _
    $region31: #{tpu_custom_call.1} parent=1 // pred_check_branch
      %251 = sbr.rel (0) target = $region33
    $region32: #{tpu_custom_call.1} parent=1 // pred_region
      %252 = dma.done [#allocation4], 128
    $region33: #{tpu_custom_call.1} parent=1 // pred_fallthru
      _
    %253 = vsyncpa [#allocation3], 1
    %254 = vsyncpa [#allocation6], 1
    %255 = vsyncpa [#allocation4], 1

</llo_original>
